<compile_context>
chip_gen: v5e
topology: v5e:2x2
jax: 0.10.0
libtpu: 0.0.40
codegen_flags: <defaults>
</compile_context>

<pallas_src>
import jax
import jax.numpy as jnp
from jax.experimental import pallas as pl
from jax.experimental.pallas import tpu as pltpu


# ----------------------------- kernels --------------------------------------


def _target_kernel_resident(x_ref, wt_ref, b_ref, o_ref):
    # x:(tm,k_pad)  wt:(k_pad,n_pad)  b:(1,n_pad) f32  o:(tm,n_pad)
    y = jnp.dot(x_ref[...], wt_ref[...], preferred_element_type=jnp.float32)
    y = y + b_ref[...]                                   # bias broadcast over rows
    inv = jax.lax.rsqrt(jnp.sum(y * y, axis=-1, keepdims=True))
    o_ref[...] = (y * inv).astype(o_ref.dtype)


def _target_kernel_streamed_inplace(x_ref, wt_ref, b_ref, o_ref):
    # f32 output: accumulate directly into the (resident) output block.
    k = pl.program_id(1)

    @pl.when(k == 0)
    def _():
        o_ref[...] = jnp.zeros_like(o_ref)

    o_ref[...] += jnp.dot(x_ref[...], wt_ref[...],
                          preferred_element_type=jnp.float32)

    @pl.when(k == pl.num_programs(1) - 1)
    def _():
        y = o_ref[...] + b_ref[...]
        inv = jax.lax.rsqrt(jnp.sum(y * y, axis=-1, keepdims=True))
        o_ref[...] = y * inv


def _target_kernel_streamed_scratch(x_ref, wt_ref, b_ref, o_ref, acc_ref):
    # sub-f32 output: accumulate in an f32 VMEM scratch.
    k = pl.program_id(1)

    @pl.when(k == 0)
    def _():
        acc_ref[...] = jnp.zeros_like(acc_ref)

    acc_ref[...] += jnp.dot(x_ref[...], wt_ref[...],
                            preferred_element_type=jnp.float32)

    @pl.when(k == pl.num_programs(1) - 1)
    def _():
        y = acc_ref[...] + b_ref[...]
        inv = jax.lax.rsqrt(jnp.sum(y * y, axis=-1, keepdims=True))
        o_ref[...] = (y * inv).astype(o_ref.dtype)


# ----------------------------- helpers --------------------------------------


def _round_up(v, m):
    return ((v + m - 1) // m) * m


def _device_kind():
    try:
        return jax.devices()[0].device_kind.lower()
    except Exception:
        return ""


def _gen_config():
    """Returns (row_tile_cap, lane_align, vmem_budget, weight_budget) bytes."""
    kind = _device_kind()
    if "v5" in kind:
        # 128 MiB VMEM, 4x128^2 MXU, ~0.8 TB/s HBM.
        return 128, 128, 96 << 20, 64 << 20
    if "v6" in kind:
        # 128 MiB VMEM, 2x256^2 MXU.
        return 256, 256, 96 << 20, 64 << 20
    # v7x (64 MiB VMEM / TC) or unknown: be conservative.
    return 256, 256, 44 << 20, 24 << 20


# ----------------------------- parameter prep (cold path) -------------------


def prepare_target_params(fc_weight, fc_bias=None, *, name="RN",
                          compute_dtype=jnp.bfloat16):
    """One-time weight preparation (transpose / cast / pad).

    compute_dtype: dtype fed to the MXU.  bf16 (default) is the native MXU
    dtype on v5e/v6e/v7x and halves weight HBM/VMEM traffic; the in-kernel
    accumulation and the bias/normalize epilogue remain f32.
    """
    fc_weight = jnp.asarray(fc_weight)
    if "vit" in name:
        wt = fc_weight.astype(compute_dtype)       # (K, N): used as x @ fc
        fc_bias = None                              # 'vit' path never adds a bias
    else:
        wt = fc_weight.T.astype(compute_dtype)      # nn.Linear (N, K) -> (K, N)
    K, N = wt.shape

    _, lane_align, _, weight_budget = _gen_config()
    n_pad = _round_up(N, lane_align)                # lane-dense, MXU-matched
    w_item = jnp.dtype(compute_dtype).itemsize

    # Resident weight whenever the double-buffered whole weight fits the
    # per-generation weight budget: the K grid collapses to one step and the
    # weight is read from HBM exactly once per forward.
    k_pad = _round_up(K, 128)
    if 2 * k_pad * n_pad * w_item <= weight_budget:
        tk = k_pad
    else:
        # Stream the weight through (tk, n_pad) double-buffered blocks.
        # TODO(synk): pl.Buffered(3) on the streamed weight for v5e.
        tk = _round_up(min(512, k_pad), lane_align)
        while 2 * tk * n_pad * w_item > weight_budget and tk > lane_align:
            tk = max(lane_align, tk // 2)
        k_pad = _round_up(K, tk)

    if (k_pad, n_pad) != (K, N):
        wt = jnp.pad(wt, ((0, k_pad - K), (0, n_pad - N)))
    if fc_bias is None:
        b_pad = jnp.zeros((1, n_pad), jnp.float32)
    else:
        b = jnp.asarray(fc_bias, jnp.float32).reshape(1, N)
        b_pad = jnp.pad(b, ((0, 0), (0, n_pad - N)))
    return {"wt": wt, "b": b_pad, "K": K, "N": N, "tk": tk}


# ----------------------------- forward (hot path) ----------------------------


def target_forward(x, params):
    """Pallas equivalent of Target.forward (L2-normalized linear projection)."""
    x = jnp.asarray(x)
    out_dtype = x.dtype
    orig_shape = x.shape
    x = x.reshape(-1, orig_shape[-1])

    wt, b = params["wt"], params["b"]
    K, N, tk = params["K"], params["N"], params["tk"]
    k_pad, n_pad = wt.shape
    M = x.shape[0]

    # Matmul in the prepared weight's dtype (bf16 by default).
    x = x.astype(wt.dtype)

    row_cap, _, budget, _ = _gen_config()
    w_item = jnp.dtype(wt.dtype).itemsize
    x_item = jnp.dtype(x.dtype).itemsize
    o_item = jnp.dtype(out_dtype).itemsize

    k_tiles = k_pad // tk
    resident = k_tiles == 1
    use_scratch = (not resident) and (out_dtype != jnp.float32)
    out_elem = o_item if (resident or use_scratch) else 4   # streamed-inplace is f32

    # --- VMEM accounting (weight uses its own itemsize) ----------------------
    fixed = 2 * tk * n_pad * w_item + 2 * n_pad * 4          # weight + bias bufs

    def _per_tm(t):
        v = 2 * t * tk * x_item                              # x double buffer
        v += 2 * t * n_pad * out_elem                        # output double buffer
        if use_scratch:
            v += t * n_pad * 4                               # f32 accumulator
        return v

    # --- row tile: largest tile that fits VMEM and minimizes M padding ------
    min_tm = max(8, 32 // x_item)          # sublane tile: 8 f32 / 16 bf16 / 32 i8
    cap = max(row_cap, min_tm)
    while fixed + _per_tm(cap) > budget and cap > min_tm:
        cap = max(min_tm, cap // 2)
    tm, m_pad = min_tm, _round_up(M, min_tm)
    t = min_tm
    while t <= cap:
        mp = _round_up(M, t)
        if mp <= m_pad:                    # prefer the largest tile at minimal pad
            tm, m_pad = t, mp
        t *= 2

    if m_pad != M or k_pad != K:
        x = jnp.pad(x, ((0, m_pad - M), (0, k_pad - K)))

    m_tiles = m_pad // tm
    vmem_limit = int(min(max(fixed + _per_tm(tm) + (4 << 20), 16 << 20),
                         budget + (16 << 20)))
    weight_passes = 1 if resident else m_tiles
    cost = pl.CostEstimate(
        flops=2 * m_pad * k_pad * n_pad,
        transcendentals=m_pad,
        bytes_accessed=int(m_pad * k_pad * x_item
                           + weight_passes * k_pad * n_pad * w_item
                           + n_pad * 4
                           + m_pad * n_pad * out_elem),
    )

    if resident:
        # Single K step: weight/bias block indices never change.
        def build(single_buffer_resident):
            if single_buffer_resident:
                wt_spec = pl.BlockSpec((k_pad, n_pad), lambda i: (0, 0),
                                       pipeline_mode=pl.Buffered(1))
                b_spec = pl.BlockSpec((1, n_pad), lambda i: (0, 0),
                                      pipeline_mode=pl.Buffered(1))
            else:
                wt_spec = pl.BlockSpec((k_pad, n_pad), lambda i: (0, 0))
                b_spec = pl.BlockSpec((1, n_pad), lambda i: (0, 0))
            return pl.pallas_call(
                _target_kernel_resident,
                out_shape=jax.ShapeDtypeStruct((m_pad, n_pad), out_dtype),
                grid_spec=pltpu.PrefetchScalarGridSpec(
                    num_scalar_prefetch=0,
                    grid=(m_tiles,),
                    in_specs=[
                        pl.BlockSpec((tm, k_pad), lambda i: (i, 0)),   # x rows
                        wt_spec,                                       # resident W
                        b_spec,                                        # bias row
                    ],
                    out_specs=pl.BlockSpec((tm, n_pad), lambda i: (i, 0)),
                ),
                compiler_params=pltpu.CompilerParams(
                    dimension_semantics=("parallel",),
                    vmem_limit_bytes=vmem_limit,
                ),
                cost_estimate=cost,
            )

        try:
            out = build(True)(x, wt, b)       # single-buffer the static weight
        except Exception:
            out = build(False)(x, wt, b)      # jax w/o pipeline_mode support
    else:
        # Streamed weight: (row, K) grid, accumulate across K.
        if use_scratch:
            kernel = _target_kernel_streamed_scratch
            scratch_shapes = [pltpu.VMEM((tm, n_pad), jnp.float32)]
            out_shape_dtype = out_dtype
        else:
            kernel = _target_kernel_streamed_inplace
            scratch_shapes = []
            out_shape_dtype = jnp.float32

        out = pl.pallas_call(
            kernel,
            out_shape=jax.ShapeDtypeStruct((m_pad, n_pad), out_shape_dtype),
            grid_spec=pltpu.PrefetchScalarGridSpec(
                num_scalar_prefetch=0,
                grid=(m_tiles, k_tiles),
                in_specs=[
                    pl.BlockSpec((tm, tk), lambda i, k: (i, k)),       # x tile
                    pl.BlockSpec((tk, n_pad), lambda i, k: (k, 0)),    # W stream
                    pl.BlockSpec((1, n_pad), lambda i, k: (0, 0)),     # bias row
                ],
                out_specs=pl.BlockSpec((tm, n_pad), lambda i, k: (i, 0)),
                scratch_shapes=scratch_shapes,
            ),
            compiler_params=pltpu.CompilerParams(
                dimension_semantics=("parallel", "arbitrary"),
                vmem_limit_bytes=vmem_limit,
            ),
            cost_estimate=cost,
        )(x, wt, b)

    out = out[:M, :N].astype(out_dtype)
    return out.reshape(orig_shape[:-1] + (N,))


# ----------------------------- reference & test ------------------------------


def _reference(x, weight, bias=None, *, name="RN"):
    w = weight.astype(x.dtype) if "vit" in name else weight.T.astype(x.dtype)
    y = jnp.matmul(x, w, precision=jax.lax.Precision.HIGHEST)
    if bias is not None and "vit" not in name:
        y = y + bias.astype(x.dtype)
    n = jnp.sqrt(jnp.sum(y.astype(jnp.float32) ** 2, axis=-1, keepdims=True))
    return (y.astype(jnp.float32) / n).astype(x.dtype)


if __name__ == "__main__":
    key = jax.random.PRNGKey(0)
    k_x, k_w, k_b, k_wv = jax.random.split(key, 4)

    # small, deliberately unaligned shapes to exercise M/K/N padding paths
    M, K, N = 10, 40, 80     # batch, in_features, out_features (num classes)

    x = jax.random.normal(k_x, (M, K), dtype=jnp.float32)

    # --- RN path: fc is nn.Linear(K, N) -> weight (N, K), bias (N,) ---------
    w_lin = jax.random.normal(k_w, (N, K), dtype=jnp.float32) * 0.05
    b_lin = jax.random.normal(k_b, (N,), dtype=jnp.float32) * 0.05
    ref_rn = _reference(x, w_lin, b_lin, name="RN")

    # default bf16 MXU compute (looser tolerance vs f32-HIGHEST reference)
    params_rn = prepare_target_params(w_lin, b_lin, name="RN")
    out_rn = target_forward(x, params_rn)
    jax.block_until_ready(out_rn)
    assert out_rn.shape == (M, N)
    assert jnp.allclose(out_rn, ref_rn, atol=3e-2, rtol=3e-2), "RN bf16 mismatch"

    # full f32 compute path (tight tolerance)
    params_rn32 = prepare_target_params(w_lin, b_lin, name="RN",
                                        compute_dtype=jnp.float32)
    out_rn32 = target_forward(x, params_rn32)
    jax.block_until_ready(out_rn32)
    assert jnp.allclose(out_rn32, ref_rn, atol=1e-5, rtol=1e-4), "RN f32 mismatch"

    # --- vit path: fc is a plain (K, N) projection matrix, no bias ----------
    w_vit = jax.random.normal(k_wv, (K, N), dtype=jnp.float32) * 0.05
    params_vit = prepare_target_params(w_vit, None, name="vit_b32")
    out_vit = target_forward(x, params_vit)
    jax.block_until_ready(out_vit)
    ref_vit = _reference(x, w_vit, None, name="vit_b32")
    assert out_vit.shape == (M, N)
    assert jnp.allclose(out_vit, ref_vit, atol=3e-2, rtol=3e-2), "vit mismatch"

    print("KERNEL_OK")
</pallas_src>

<mosaic_0001>
module attributes {stable_mosaic.version = 11 : i64} {
  func.func @_target_kernel_resident(%arg0: i32, %arg1: memref<16x128xbf16, #tpu.memory_space<vmem>>, %arg2: memref<128x256xbf16, #tpu.memory_space<vmem>>, %arg3: memref<1x256xf32, #tpu.memory_space<vmem>>, %arg4: memref<16x256xf32, #tpu.memory_space<vmem>>) attributes {dimension_semantics = [#tpu.dimension_semantics<parallel>], iteration_bounds = array<i64: 1>, scalar_prefetch = 0 : i64, scratch_operands = 0 : i64, tpu.core_type = #tpu.core_type<tc>, window_params = [{transform_indices = @transform_0, window_bounds = array<i64: 16, 128>}, {pipeline_mode = #tpu.pipeline_mode<synchronous>, transform_indices = @transform_1, window_bounds = array<i64: 128, 256>}, {pipeline_mode = #tpu.pipeline_mode<synchronous>, transform_indices = @transform_2, window_bounds = array<i64: 1, 256>}, {transform_indices = @transform_3, window_bounds = array<i64: 16, 256>}]} {
    %c0 = arith.constant 0 : index
    %c0_0 = arith.constant 0 : index
    %0 = vector.load %arg1[%c0, %c0_0] : memref<16x128xbf16, #tpu.memory_space<vmem>>, vector<16x128xbf16>
    %c0_1 = arith.constant 0 : index
    %c0_2 = arith.constant 0 : index
    %1 = vector.load %arg2[%c0_1, %c0_2] : memref<128x256xbf16, #tpu.memory_space<vmem>>, vector<128x256xbf16>
    %cst = arith.constant dense<0.000000e+00> : vector<16x256xf32>
    %2 = tpu.matmul %0, %1, %cst {dimension_numbers = #tpu.dot_dimension_numbers<[1], [0], [0], [1], [0, 0, 1, 1], [], []>} : vector<16x128xbf16>, vector<128x256xbf16>, vector<16x256xf32> -> vector<16x256xf32>
    %c0_3 = arith.constant 0 : index
    %c0_4 = arith.constant 0 : index
    %3 = vector.load %arg3[%c0_3, %c0_4] : memref<1x256xf32, #tpu.memory_space<vmem>>, vector<1x256xf32>
    %4 = vector.broadcast %3 : vector<1x256xf32> to vector<16x256xf32>
    %5 = arith.addf %2, %4 : vector<16x256xf32>
    %6 = arith.mulf %5, %5 : vector<16x256xf32>
    %cst_5 = arith.constant dense<0.000000e+00> : vector<16xf32>
    %7 = vector.multi_reduction <add>, %6, %cst_5 [1] : vector<16x256xf32> to vector<16xf32>
    %8 = vector.shape_cast %7 : vector<16xf32> to vector<16x1xf32>
    %9 = math.rsqrt %8 : vector<16x1xf32>
    %10 = vector.broadcast %9 : vector<16x1xf32> to vector<16x256xf32>
    %11 = arith.mulf %5, %10 : vector<16x256xf32>
    %c0_6 = arith.constant 0 : index
    %c0_7 = arith.constant 0 : index
    %12 = vector.load %arg4[%c0_6, %c0_7] : memref<16x256xf32, #tpu.memory_space<vmem>>, vector<16x256xf32>
    tpu.vector_store %arg4[%c0_6, %c0_7], %11 {strides = array<i32>} : memref<16x256xf32, #tpu.memory_space<vmem>>, vector<16x256xf32>,
    return
  }
  func.func @transform_0(%arg0: i32) -> (i32, i32) {
    %c0_i32 = arith.constant 0 : i32
    %c0_i32_0 = arith.constant 0 : i32
    return %arg0, %c0_i32 : i32, i32
  }
  func.func @transform_1(%arg0: i32) -> (i32, i32) {
    %c0_i32 = arith.constant 0 : i32
    %c0_i32_0 = arith.constant 0 : i32
    %c0_i32_1 = arith.constant 0 : i32
    return %c0_i32, %c0_i32_0 : i32, i32
  }
  func.func @transform_2(%arg0: i32) -> (i32, i32) {
    %c0_i32 = arith.constant 0 : i32
    %c0_i32_0 = arith.constant 0 : i32
    %c0_i32_1 = arith.constant 0 : i32
    return %c0_i32, %c0_i32_0 : i32, i32
  }
  func.func @transform_3(%arg0: i32) -> (i32, i32) {
    %c0_i32 = arith.constant 0 : i32
    %c0_i32_0 = arith.constant 0 : i32
    return %arg0, %c0_i32 : i32, i32
  }
}

module attributes {stable_mosaic.version = 11 : i64} {
  func.func @_target_kernel_resident(%arg0: i32, %arg1: memref<16x128xbf16, #tpu.memory_space<vmem>>, %arg2: memref<128x256xbf16, #tpu.memory_space<vmem>>, %arg3: memref<1x256xf32, #tpu.memory_space<vmem>>, %arg4: memref<16x256xf32, #tpu.memory_space<vmem>>) attributes {dimension_semantics = [#tpu.dimension_semantics<parallel>], iteration_bounds = array<i64: 1>, scalar_prefetch = 0 : i64, scratch_operands = 0 : i64, tpu.core_type = #tpu.core_type<tc>, window_params = [{transform_indices = @transform_0, window_bounds = array<i64: 16, 128>}, {pipeline_mode = #tpu.pipeline_mode<synchronous>, transform_indices = @transform_1, window_bounds = array<i64: 128, 256>}, {pipeline_mode = #tpu.pipeline_mode<synchronous>, transform_indices = @transform_2, window_bounds = array<i64: 1, 256>}, {transform_indices = @transform_3, window_bounds = array<i64: 16, 256>}]} {
    %c0 = arith.constant 0 : index
    %c0_0 = arith.constant 0 : index
    %0 = vector.load %arg1[%c0, %c0_0] : memref<16x128xbf16, #tpu.memory_space<vmem>>, vector<16x128xbf16>
    %c0_1 = arith.constant 0 : index
    %c0_2 = arith.constant 0 : index
    %1 = vector.load %arg2[%c0_1, %c0_2] : memref<128x256xbf16, #tpu.memory_space<vmem>>, vector<128x256xbf16>
    %cst = arith.constant dense<0.000000e+00> : vector<16x256xf32>
    %2 = tpu.matmul %0, %1, %cst {dimension_numbers = #tpu.dot_dimension_numbers<[1], [0], [0], [1], [0, 0, 1, 1], [], []>} : vector<16x128xbf16>, vector<128x256xbf16>, vector<16x256xf32> -> vector<16x256xf32>
    %c0_3 = arith.constant 0 : index
    %c0_4 = arith.constant 0 : index
    %3 = vector.load %arg3[%c0_3, %c0_4] : memref<1x256xf32, #tpu.memory_space<vmem>>, vector<1x256xf32>
    %4 = vector.broadcast %3 : vector<1x256xf32> to vector<16x256xf32>
    %5 = arith.addf %2, %4 : vector<16x256xf32>
    %6 = arith.mulf %5, %5 : vector<16x256xf32>
    %cst_5 = arith.constant dense<0.000000e+00> : vector<16xf32>
    %7 = vector.multi_reduction <add>, %6, %cst_5 [1] : vector<16x256xf32> to vector<16xf32>
    %8 = vector.shape_cast %7 : vector<16xf32> to vector<16x1xf32>
    %9 = math.rsqrt %8 : vector<16x1xf32>
    %10 = vector.broadcast %9 : vector<16x1xf32> to vector<16x256xf32>
    %11 = arith.mulf %5, %10 : vector<16x256xf32>
    %c0_6 = arith.constant 0 : index
    %c0_7 = arith.constant 0 : index
    %12 = vector.load %arg4[%c0_6, %c0_7] : memref<16x256xf32, #tpu.memory_space<vmem>>, vector<16x256xf32>
    tpu.vector_store %arg4[%c0_6, %c0_7], %11 {strides = array<i32>} : memref<16x256xf32, #tpu.memory_space<vmem>>, vector<16x256xf32>,
    return
  }
  func.func @transform_0(%arg0: i32) -> (i32, i32) {
    %c0_i32 = arith.constant 0 : i32
    %c0_i32_0 = arith.constant 0 : i32
    return %arg0, %c0_i32 : i32, i32
  }
  func.func @transform_1(%arg0: i32) -> (i32, i32) {
    %c0_i32 = arith.constant 0 : i32
    %c0_i32_0 = arith.constant 0 : i32
    %c0_i32_1 = arith.constant 0 : i32
    return %c0_i32, %c0_i32_0 : i32, i32
  }
  func.func @transform_2(%arg0: i32) -> (i32, i32) {
    %c0_i32 = arith.constant 0 : i32
    %c0_i32_0 = arith.constant 0 : i32
    %c0_i32_1 = arith.constant 0 : i32
    return %c0_i32, %c0_i32_0 : i32, i32
  }
  func.func @transform_3(%arg0: i32) -> (i32, i32) {
    %c0_i32 = arith.constant 0 : i32
    %c0_i32_0 = arith.constant 0 : i32
    return %arg0, %c0_i32 : i32, i32
  }
}

</mosaic_0001>

<llo_original>
// kernel: tpu_custom_call.1
$region0: #{tpu_custom_call.1}
  #allocation0 [shape = 'u32[]', space=smem, size = 0x4, offset = 0x4, fixed_abs, tag = 'smem constant byte address 0x4 - core index']
  #allocation1 [shape = 'u32[72,128]{1,0:T(1,128)}', space=vmem, size = 0x9000, scoped, tag = 'internal scratch']
  %s0 = inlined_call_operand.hbm [shape: bf16[16,128], index: 0, kind: input, shape index: {}]
  %s1 = inlined_call_operand.hbm [shape: bf16[128,256], index: 1, kind: input, shape index: {}]
  %s2 = inlined_call_operand.hbm [shape: f32[1,256], index: 2, kind: input, shape index: {}]
  %s3 = inlined_call_operand.hbm [shape: f32[16,256], index: 3, kind: output, shape index: {}]
  %s4 = sld [smem:[#allocation0]]
  $region34: #{tpu_custom_call.1} parent=0
    _
  %s6 = ssub.s32 1, %s4
  %s7 = scalar_select 0, %s6, %s4
  $region1: #{tpu_custom_call.1} parent=0
    #allocation2 [shape = 'u8[4096]{0}', space=vmem, size = 0x1000, scoped, tag = 'input window, operand 0, single buffered']
    #allocation3 [shape = 's32[1]{0}', space=sflag, size = 0x4, scoped, tag = 'scoped memory for tpu_custom_call.1']
    #allocation4 [shape = 's32[1]{0}', space=sflag, size = 0x4, scoped, tag = 'scoped memory for tpu_custom_call.1']
    #allocation5 [shape = 'u8[65536]{0}', space=vmem, size = 0x10000, scoped, tag = 'input window, operand 1, single buffered']
    #allocation6 [shape = 's32[1]{0}', space=sflag, size = 0x4, scoped, tag = 'scoped memory for tpu_custom_call.1']
    #allocation7 [shape = 'u8[1024]{0}', space=vmem, size = 0x400, scoped, tag = 'input window, operand 2, single buffered']
    #allocation8 [shape = 'u8[16384]{0}', space=vmem, size = 0x4000, scoped, tag = 'output window, operand 0, single buffered']
    %8 = vsyncpa [#allocation3], 0
    %9 = vsyncpa [#allocation6], 0
    %10 = vsyncpa [#allocation4], 0
    // Predicated region
    $region2: #{tpu_custom_call.1} parent=1 // pred_check
      _
    $region3: #{tpu_custom_call.1} parent=1 // pred_check_branch
      %12 = sbr.rel (0) target = $region5
    $region4: #{tpu_custom_call.1} parent=1 // pred_region
      %14 = vsyncadd [#allocation3], 0
      %s15 = sshll.u32 %s0, 4
      %s16 = int_to_ptr.hbm [resolvable:$true] %s15
      %s17 = sshll.u32 [#allocation2], 4
      %s18 = int_to_ptr.vmem [resolvable:$true] %s17
      %23 = dma.hbm_to_vmem [thread:$0]  %s16, 128, %s18, [#allocation3], 64, 64, 4
    $region5: #{tpu_custom_call.1} parent=1 // pred_fallthru
      _
    // Predicated region
    $region6: #{tpu_custom_call.1} parent=1 // pred_check
      _
    $region7: #{tpu_custom_call.1} parent=1 // pred_check_branch
      %25 = sbr.rel (0) target = $region9
    $region8: #{tpu_custom_call.1} parent=1 // pred_region
      %27 = vsyncadd [#allocation6], 0
      %s28 = sshll.u32 %s1, 4
      %s29 = int_to_ptr.hbm [resolvable:$true] %s28
      %s30 = sshll.u32 [#allocation5], 4
      %s31 = int_to_ptr.vmem [resolvable:$true] %s30
      %36 = dma.hbm_to_vmem [thread:$0]  %s29, 2048, %s31, [#allocation6], 128, 128, 8
    $region9: #{tpu_custom_call.1} parent=1 // pred_fallthru
      _
    // Predicated region
    $region10: #{tpu_custom_call.1} parent=1 // pred_check
      _
    $region11: #{tpu_custom_call.1} parent=1 // pred_check_branch
      %38 = sbr.rel (0) target = $region13
    $region12: #{tpu_custom_call.1} parent=1 // pred_region
      %40 = vsyncadd [#allocation6], 0
      %s42 = sshll.u32 %s2, 4
      %s43 = int_to_ptr.hbm [resolvable:$true] %s42
      %s44 = sshll.u32 [#allocation7], 4
      %s45 = int_to_ptr.vmem [resolvable:$true] %s44
      %47 = dma.hbm_to_vmem [thread:$0]  %s43, 32, %s45, [#allocation6]
    $region13: #{tpu_custom_call.1} parent=1 // pred_fallthru
      _
    // Predicated region
    $region14: #{tpu_custom_call.1} parent=1 // pred_check
      _
    $region15: #{tpu_custom_call.1} parent=1 // pred_check_branch
      %49 = sbr.rel (0) target = $region17
    $region16: #{tpu_custom_call.1} parent=1 // pred_region
      %51 = dma.done [#allocation3], 128
    $region17: #{tpu_custom_call.1} parent=1 // pred_fallthru
      _
    // Predicated region
    $region18: #{tpu_custom_call.1} parent=1 // pred_check
      _
    $region19: #{tpu_custom_call.1} parent=1 // pred_check_branch
      %53 = sbr.rel (0) target = $region21
    $region20: #{tpu_custom_call.1} parent=1 // pred_region
      %55 = dma.done [#allocation6], 2048
    $region21: #{tpu_custom_call.1} parent=1 // pred_fallthru
      _
    // Predicated region
    $region22: #{tpu_custom_call.1} parent=1 // pred_check
      _
    $region23: #{tpu_custom_call.1} parent=1 // pred_check_branch
      %57 = sbr.rel (0) target = $region25
    $region24: #{tpu_custom_call.1} parent=1 // pred_region
      %59 = dma.done [#allocation6], 32
    $region25: #{tpu_custom_call.1} parent=1 // pred_fallthru
      _
    %v60 = vld [vmem:[#allocation2] sm:$0xf]
    %v61 = vld [vmem:[#allocation2 + $0x4] sm:$0xf]
    %v62 = vld [vmem:[#allocation5] sm:$0xff]
    %v63 = vld [vmem:[#allocation5 + $0x8] sm:$0xff]
    %v64 = vld [vmem:[#allocation5 + $0x10] sm:$0xff]
    %v65 = vld [vmem:[#allocation5 + $0x18] sm:$0xff]
    %v66 = vld [vmem:[#allocation5 + $0x20] sm:$0xff]
    %v67 = vld [vmem:[#allocation5 + $0x28] sm:$0xff]
    %v68 = vld [vmem:[#allocation5 + $0x30] sm:$0xff]
    %v69 = vld [vmem:[#allocation5 + $0x38] sm:$0xff]
    %v70 = vld [vmem:[#allocation5 + $0x40] sm:$0xff]
    %v71 = vld [vmem:[#allocation5 + $0x48] sm:$0xff]
    %v72 = vld [vmem:[#allocation5 + $0x50] sm:$0xff]
    %v73 = vld [vmem:[#allocation5 + $0x58] sm:$0xff]
    %v74 = vld [vmem:[#allocation5 + $0x60] sm:$0xff]
    %v75 = vld [vmem:[#allocation5 + $0x68] sm:$0xff]
    %v76 = vld [vmem:[#allocation5 + $0x70] sm:$0xff]
    %v77 = vld [vmem:[#allocation5 + $0x78] sm:$0xff]
    %v78 = vld [vmem:[#allocation7] sm:$0x3]
    %v80 = vperm.slane %v78, 0
    %v81 = vperm.slane %v78, 1
    %v86 = vunpack.c.l.b16 %v60
    %v87 = vunpack.c.l.b16 %v61
    %v88 = vpack.c.b16 %v87, %v86
    %v106 = vunpack.c.l.b16 %v62
    %v107 = vunpack.c.h.b16 %v62
    %v108 = vunpack.c.l.b16 %v63
    %v109 = vunpack.c.h.b16 %v63
    %v110 = vunpack.c.l.b16 %v64
    %v111 = vunpack.c.h.b16 %v64
    %v112 = vunpack.c.l.b16 %v65
    %v113 = vunpack.c.h.b16 %v65
    %v114 = vunpack.c.l.b16 %v66
    %v115 = vunpack.c.h.b16 %v66
    %v116 = vunpack.c.l.b16 %v67
    %v117 = vunpack.c.h.b16 %v67
    %v118 = vunpack.c.l.b16 %v68
    %v119 = vunpack.c.h.b16 %v68
    %v120 = vunpack.c.l.b16 %v69
    %v121 = vunpack.c.h.b16 %v69
    %v122 = vunpack.c.l.b16 %v70
    %v123 = vunpack.c.h.b16 %v70
    %v124 = vunpack.c.l.b16 %v71
    %v125 = vunpack.c.h.b16 %v71
    %v126 = vunpack.c.l.b16 %v72
    %v127 = vunpack.c.h.b16 %v72
    %v128 = vunpack.c.l.b16 %v73
    %v129 = vunpack.c.h.b16 %v73
    %v130 = vunpack.c.l.b16 %v74
    %v131 = vunpack.c.h.b16 %v74
    %v132 = vunpack.c.l.b16 %v75
    %v133 = vunpack.c.h.b16 %v75
    %v134 = vunpack.c.l.b16 %v76
    %v135 = vunpack.c.h.b16 %v76
    %v136 = vunpack.c.l.b16 %v77
    %v137 = vunpack.c.h.b16 %v77
    %v138 = vpack.c.b16 %v108, %v106
    %v139 = vpack.c.b16 %v109, %v107
    %v140 = vpack.c.b16 %v112, %v110
    %v141 = vpack.c.b16 %v113, %v111
    %v142 = vpack.c.b16 %v116, %v114
    %v143 = vpack.c.b16 %v117, %v115
    %v144 = vpack.c.b16 %v120, %v118
    %v145 = vpack.c.b16 %v121, %v119
    %v146 = vpack.c.b16 %v124, %v122
    %v147 = vpack.c.b16 %v125, %v123
    %v148 = vpack.c.b16 %v128, %v126
    %v149 = vpack.c.b16 %v129, %v127
    %v150 = vpack.c.b16 %v132, %v130
    %v151 = vpack.c.b16 %v133, %v131
    %v152 = vpack.c.b16 %v136, %v134
    %v153 = vpack.c.b16 %v137, %v135
    %170 = vmatpush.bf16.msra.mxu0 %v152
    %171 = vmatpush.bf16.msra.mxu0 %v150
    %172 = vmatpush.bf16.msra.mxu0 %v148
    %173 = vmatpush.bf16.msra.mxu0 %v146
    %174 = vmatpush.bf16.msra.mxu0 %v144
    %175 = vmatpush.bf16.msra.mxu0 %v142
    %176 = vmatpush.bf16.msra.mxu0 %v140
    %177 = vmatpush.bf16.msra.mxu0 %v138
    %178 = vmatmul.bf16.gmra.mxu0 %v88
    %v179 = vpop.f32.mrf.mxu0
    %v180 = vadd.f32 %v80, %v179
    %v181 = vpop.f32.mrf.mxu0
    %v182 = vadd.f32 %v80, %v181
    %183 = vdwg.mxu0
    %184 = vmatpush.bf16.msra.mxu0 %v153
    %185 = vmatpush.bf16.msra.mxu0 %v151
    %186 = vmatpush.bf16.msra.mxu0 %v149
    %187 = vmatpush.bf16.msra.mxu0 %v147
    %188 = vmatpush.bf16.msra.mxu0 %v145
    %189 = vmatpush.bf16.msra.mxu0 %v143
    %190 = vmatpush.bf16.msra.mxu0 %v141
    %191 = vmatpush.bf16.msra.mxu0 %v139
    %192 = vmatmul.bf16.gmra.mxu0 %v88
    %v193 = vpop.f32.mrf.mxu0
    %v194 = vadd.f32 %v81, %v193
    %v195 = vpop.f32.mrf.mxu0
    %v196 = vadd.f32 %v81, %v195
    %197 = vdwg.mxu0
    %v198 = vmul.f32 %v180, %v180
    %v199 = vmul.f32 %v194, %v194
    %v200 = vmul.f32 %v182, %v182
    %v201 = vmul.f32 %v196, %v196
    %v202 = vadd.f32 %v198, %v199
    %203 = vadd.xlane.f32.xlu0 %v202
    %v204 = vpop.xlane.xlu0 %203
    %v205 = vadd.f32 %v200, %v201
    %206 = vadd.xlane.f32.xlu0 %v205
    %v207 = vpop.xlane.xlu0 %206
    %v208 = vrsqrt.pop %v204
    %v209 = vmul.f32 %v208, %v204
    %v210 = vmul.f32 %v209, %v208
    %v211 = vmul.f32 0.5, %v210
    %v212 = vsub.f32 1.5, %v211
    %v213 = vmul.f32 %v208, %v212
    %vm214 = vweird.f32 %v204
    %vm215 = vweird.f32 %v208
    %vm216 = vmor %vm214, %vm215
    %v217 = vsel %vm216, %v208, %v213
    %v218 = vrsqrt.pop %v207
    %v219 = vmul.f32 %v218, %v207
    %v220 = vmul.f32 %v219, %v218
    %v221 = vmul.f32 0.5, %v220
    %v222 = vsub.f32 1.5, %v221
    %v223 = vmul.f32 %v218, %v222
    %vm224 = vweird.f32 %v207
    %vm225 = vweird.f32 %v218
    %vm226 = vmor %vm224, %vm225
    %v227 = vsel %vm226, %v218, %v223
    %v228 = vmul.f32 %v180, %v217
    %v229 = vmul.f32 %v194, %v217
    %v230 = vmul.f32 %v182, %v227
    %v231 = vmul.f32 %v196, %v227
    %232 = vst [vmem:[#allocation8] sm:$0xff] %v228
    %233 = vst [vmem:[#allocation8 + $0x8] sm:$0xff] %v229
    %234 = vst [vmem:[#allocation8 + $0x10] sm:$0xff] %v230
    %235 = vst [vmem:[#allocation8 + $0x18] sm:$0xff] %v231
    // Predicated region
    $region26: #{tpu_custom_call.1} parent=1 // pred_check
      _
    $region27: #{tpu_custom_call.1} parent=1 // pred_check_branch
      %237 = sbr.rel (0) target = $region29
    $region28: #{tpu_custom_call.1} parent=1 // pred_region
      %239 = vsyncadd [#allocation4], 0
      %s240 = sshll.u32 [#allocation8], 4
      %s241 = int_to_ptr.vmem [resolvable:$true] %s240
      %s242 = sshll.u32 %s3, 4
      %s243 = int_to_ptr.hbm [resolvable:$true] %s242
      %248 = dma.vmem_to_hbm [thread:$0]  %s241, 512, %s243, [#allocation4], 256, 256, 16
    $region29: #{tpu_custom_call.1} parent=1 // pred_fallthru
      _
    // Predicated region
    $region30: #{tpu_custom_call.1} parent=1 // pred_check
      _
    $region31: #{tpu_custom_call.1} parent=1 // pred_check_branch
      %250 = sbr.rel (0) target = $region33
    $region32: #{tpu_custom_call.1} parent=1 // pred_region
      %252 = dma.done [#allocation4], 512
    $region33: #{tpu_custom_call.1} parent=1 // pred_fallthru
      _
    %253 = vsyncpa [#allocation3], 1
    %254 = vsyncpa [#allocation6], 1
    %255 = vsyncpa [#allocation4], 1

// kernel: tpu_custom_call.1
$region0: #{tpu_custom_call.1}
  #allocation0 [shape = 'u32[]', space=smem, size = 0x4, offset = 0x4, fixed_abs, tag = 'smem constant byte address 0x4 - core index']
  #allocation1 [shape = 'u32[72,128]{1,0:T(1,128)}', space=vmem, size = 0x9000, scoped, tag = 'internal scratch']
  %s0 = inlined_call_operand.hbm [shape: bf16[16,128], index: 0, kind: input, shape index: {}]
  %s1 = inlined_call_operand.hbm [shape: bf16[128,256], index: 1, kind: input, shape index: {}]
  %s2 = inlined_call_operand.hbm [shape: f32[1,256], index: 2, kind: input, shape index: {}]
  %s3 = inlined_call_operand.hbm [shape: f32[16,256], index: 3, kind: output, shape index: {}]
  %s4 = sld [smem:[#allocation0]]
  $region34: #{tpu_custom_call.1} parent=0
    _
  %s6 = ssub.s32 1, %s4
  %s7 = scalar_select 0, %s6, %s4
  $region1: #{tpu_custom_call.1} parent=0
    #allocation2 [shape = 'u8[4096]{0}', space=vmem, size = 0x1000, scoped, tag = 'input window, operand 0, single buffered']
    #allocation3 [shape = 's32[1]{0}', space=sflag, size = 0x4, scoped, tag = 'scoped memory for tpu_custom_call.1']
    #allocation4 [shape = 's32[1]{0}', space=sflag, size = 0x4, scoped, tag = 'scoped memory for tpu_custom_call.1']
    #allocation5 [shape = 'u8[65536]{0}', space=vmem, size = 0x10000, scoped, tag = 'input window, operand 1, single buffered']
    #allocation6 [shape = 's32[1]{0}', space=sflag, size = 0x4, scoped, tag = 'scoped memory for tpu_custom_call.1']
    #allocation7 [shape = 'u8[1024]{0}', space=vmem, size = 0x400, scoped, tag = 'input window, operand 2, single buffered']
    #allocation8 [shape = 'u8[16384]{0}', space=vmem, size = 0x4000, scoped, tag = 'output window, operand 0, single buffered']
    %8 = vsyncpa [#allocation3], 0
    %9 = vsyncpa [#allocation6], 0
    %10 = vsyncpa [#allocation4], 0
    // Predicated region
    $region2: #{tpu_custom_call.1} parent=1 // pred_check
      _
    $region3: #{tpu_custom_call.1} parent=1 // pred_check_branch
      %12 = sbr.rel (0) target = $region5
    $region4: #{tpu_custom_call.1} parent=1 // pred_region
      %14 = vsyncadd [#allocation3], 0
      %s15 = sshll.u32 %s0, 4
      %s16 = int_to_ptr.hbm [resolvable:$true] %s15
      %s17 = sshll.u32 [#allocation2], 4
      %s18 = int_to_ptr.vmem [resolvable:$true] %s17
      %23 = dma.hbm_to_vmem [thread:$0]  %s16, 128, %s18, [#allocation3], 64, 64, 4
    $region5: #{tpu_custom_call.1} parent=1 // pred_fallthru
      _
    // Predicated region
    $region6: #{tpu_custom_call.1} parent=1 // pred_check
      _
    $region7: #{tpu_custom_call.1} parent=1 // pred_check_branch
      %25 = sbr.rel (0) target = $region9
    $region8: #{tpu_custom_call.1} parent=1 // pred_region
      %27 = vsyncadd [#allocation6], 0
      %s28 = sshll.u32 %s1, 4
      %s29 = int_to_ptr.hbm [resolvable:$true] %s28
      %s30 = sshll.u32 [#allocation5], 4
      %s31 = int_to_ptr.vmem [resolvable:$true] %s30
      %36 = dma.hbm_to_vmem [thread:$0]  %s29, 2048, %s31, [#allocation6], 128, 128, 8
    $region9: #{tpu_custom_call.1} parent=1 // pred_fallthru
      _
    // Predicated region
    $region10: #{tpu_custom_call.1} parent=1 // pred_check
      _
    $region11: #{tpu_custom_call.1} parent=1 // pred_check_branch
      %38 = sbr.rel (0) target = $region13
    $region12: #{tpu_custom_call.1} parent=1 // pred_region
      %40 = vsyncadd [#allocation6], 0
      %s42 = sshll.u32 %s2, 4
      %s43 = int_to_ptr.hbm [resolvable:$true] %s42
      %s44 = sshll.u32 [#allocation7], 4
      %s45 = int_to_ptr.vmem [resolvable:$true] %s44
      %47 = dma.hbm_to_vmem [thread:$0]  %s43, 32, %s45, [#allocation6]
    $region13: #{tpu_custom_call.1} parent=1 // pred_fallthru
      _
    // Predicated region
    $region14: #{tpu_custom_call.1} parent=1 // pred_check
      _
    $region15: #{tpu_custom_call.1} parent=1 // pred_check_branch
      %49 = sbr.rel (0) target = $region17
    $region16: #{tpu_custom_call.1} parent=1 // pred_region
      %51 = dma.done [#allocation3], 128
    $region17: #{tpu_custom_call.1} parent=1 // pred_fallthru
      _
    // Predicated region
    $region18: #{tpu_custom_call.1} parent=1 // pred_check
      _
    $region19: #{tpu_custom_call.1} parent=1 // pred_check_branch
      %53 = sbr.rel (0) target = $region21
    $region20: #{tpu_custom_call.1} parent=1 // pred_region
      %55 = dma.done [#allocation6], 2048
    $region21: #{tpu_custom_call.1} parent=1 // pred_fallthru
      _
    // Predicated region
    $region22: #{tpu_custom_call.1} parent=1 // pred_check
      _
    $region23: #{tpu_custom_call.1} parent=1 // pred_check_branch
      %57 = sbr.rel (0) target = $region25
    $region24: #{tpu_custom_call.1} parent=1 // pred_region
      %59 = dma.done [#allocation6], 32
    $region25: #{tpu_custom_call.1} parent=1 // pred_fallthru
      _
    %v60 = vld [vmem:[#allocation2] sm:$0xf]
    %v61 = vld [vmem:[#allocation2 + $0x4] sm:$0xf]
    %v62 = vld [vmem:[#allocation5] sm:$0xff]
    %v63 = vld [vmem:[#allocation5 + $0x8] sm:$0xff]
    %v64 = vld [vmem:[#allocation5 + $0x10] sm:$0xff]
    %v65 = vld [vmem:[#allocation5 + $0x18] sm:$0xff]
    %v66 = vld [vmem:[#allocation5 + $0x20] sm:$0xff]
    %v67 = vld [vmem:[#allocation5 + $0x28] sm:$0xff]
    %v68 = vld [vmem:[#allocation5 + $0x30] sm:$0xff]
    %v69 = vld [vmem:[#allocation5 + $0x38] sm:$0xff]
    %v70 = vld [vmem:[#allocation5 + $0x40] sm:$0xff]
    %v71 = vld [vmem:[#allocation5 + $0x48] sm:$0xff]
    %v72 = vld [vmem:[#allocation5 + $0x50] sm:$0xff]
    %v73 = vld [vmem:[#allocation5 + $0x58] sm:$0xff]
    %v74 = vld [vmem:[#allocation5 + $0x60] sm:$0xff]
    %v75 = vld [vmem:[#allocation5 + $0x68] sm:$0xff]
    %v76 = vld [vmem:[#allocation5 + $0x70] sm:$0xff]
    %v77 = vld [vmem:[#allocation5 + $0x78] sm:$0xff]
    %v78 = vld [vmem:[#allocation7] sm:$0x3]
    %v80 = vperm.slane %v78, 0
    %v81 = vperm.slane %v78, 1
    %v86 = vunpack.c.l.b16 %v60
    %v87 = vunpack.c.l.b16 %v61
    %v88 = vpack.c.b16 %v87, %v86
    %v106 = vunpack.c.l.b16 %v62
    %v107 = vunpack.c.h.b16 %v62
    %v108 = vunpack.c.l.b16 %v63
    %v109 = vunpack.c.h.b16 %v63
    %v110 = vunpack.c.l.b16 %v64
    %v111 = vunpack.c.h.b16 %v64
    %v112 = vunpack.c.l.b16 %v65
    %v113 = vunpack.c.h.b16 %v65
    %v114 = vunpack.c.l.b16 %v66
    %v115 = vunpack.c.h.b16 %v66
    %v116 = vunpack.c.l.b16 %v67
    %v117 = vunpack.c.h.b16 %v67
    %v118 = vunpack.c.l.b16 %v68
    %v119 = vunpack.c.h.b16 %v68
    %v120 = vunpack.c.l.b16 %v69
    %v121 = vunpack.c.h.b16 %v69
    %v122 = vunpack.c.l.b16 %v70
    %v123 = vunpack.c.h.b16 %v70
    %v124 = vunpack.c.l.b16 %v71
    %v125 = vunpack.c.h.b16 %v71
    %v126 = vunpack.c.l.b16 %v72
    %v127 = vunpack.c.h.b16 %v72
    %v128 = vunpack.c.l.b16 %v73
    %v129 = vunpack.c.h.b16 %v73
    %v130 = vunpack.c.l.b16 %v74
    %v131 = vunpack.c.h.b16 %v74
    %v132 = vunpack.c.l.b16 %v75
    %v133 = vunpack.c.h.b16 %v75
    %v134 = vunpack.c.l.b16 %v76
    %v135 = vunpack.c.h.b16 %v76
    %v136 = vunpack.c.l.b16 %v77
    %v137 = vunpack.c.h.b16 %v77
    %v138 = vpack.c.b16 %v108, %v106
    %v139 = vpack.c.b16 %v109, %v107
    %v140 = vpack.c.b16 %v112, %v110
    %v141 = vpack.c.b16 %v113, %v111
    %v142 = vpack.c.b16 %v116, %v114
    %v143 = vpack.c.b16 %v117, %v115
    %v144 = vpack.c.b16 %v120, %v118
    %v145 = vpack.c.b16 %v121, %v119
    %v146 = vpack.c.b16 %v124, %v122
    %v147 = vpack.c.b16 %v125, %v123
    %v148 = vpack.c.b16 %v128, %v126
    %v149 = vpack.c.b16 %v129, %v127
    %v150 = vpack.c.b16 %v132, %v130
    %v151 = vpack.c.b16 %v133, %v131
    %v152 = vpack.c.b16 %v136, %v134
    %v153 = vpack.c.b16 %v137, %v135
    %170 = vmatpush.bf16.msra.mxu0 %v152
    %171 = vmatpush.bf16.msra.mxu0 %v150
    %172 = vmatpush.bf16.msra.mxu0 %v148
    %173 = vmatpush.bf16.msra.mxu0 %v146
    %174 = vmatpush.bf16.msra.mxu0 %v144
    %175 = vmatpush.bf16.msra.mxu0 %v142
    %176 = vmatpush.bf16.msra.mxu0 %v140
    %177 = vmatpush.bf16.msra.mxu0 %v138
    %178 = vmatmul.bf16.gmra.mxu0 %v88
    %v179 = vpop.f32.mrf.mxu0
    %v180 = vadd.f32 %v80, %v179
    %v181 = vpop.f32.mrf.mxu0
    %v182 = vadd.f32 %v80, %v181
    %183 = vdwg.mxu0
    %184 = vmatpush.bf16.msra.mxu0 %v153
    %185 = vmatpush.bf16.msra.mxu0 %v151
    %186 = vmatpush.bf16.msra.mxu0 %v149
    %187 = vmatpush.bf16.msra.mxu0 %v147
    %188 = vmatpush.bf16.msra.mxu0 %v145
    %189 = vmatpush.bf16.msra.mxu0 %v143
    %190 = vmatpush.bf16.msra.mxu0 %v141
    %191 = vmatpush.bf16.msra.mxu0 %v139
    %192 = vmatmul.bf16.gmra.mxu0 %v88
    %v193 = vpop.f32.mrf.mxu0
    %v194 = vadd.f32 %v81, %v193
    %v195 = vpop.f32.mrf.mxu0
    %v196 = vadd.f32 %v81, %v195
    %197 = vdwg.mxu0
    %v198 = vmul.f32 %v180, %v180
    %v199 = vmul.f32 %v194, %v194
    %v200 = vmul.f32 %v182, %v182
    %v201 = vmul.f32 %v196, %v196
    %v202 = vadd.f32 %v198, %v199
    %203 = vadd.xlane.f32.xlu0 %v202
    %v204 = vpop.xlane.xlu0 %203
    %v205 = vadd.f32 %v200, %v201
    %206 = vadd.xlane.f32.xlu0 %v205
    %v207 = vpop.xlane.xlu0 %206
    %v208 = vrsqrt.pop %v204
    %v209 = vmul.f32 %v208, %v204
    %v210 = vmul.f32 %v209, %v208
    %v211 = vmul.f32 0.5, %v210
    %v212 = vsub.f32 1.5, %v211
    %v213 = vmul.f32 %v208, %v212
    %vm214 = vweird.f32 %v204
    %vm215 = vweird.f32 %v208
    %vm216 = vmor %vm214, %vm215
    %v217 = vsel %vm216, %v208, %v213
    %v218 = vrsqrt.pop %v207
    %v219 = vmul.f32 %v218, %v207
    %v220 = vmul.f32 %v219, %v218
    %v221 = vmul.f32 0.5, %v220
    %v222 = vsub.f32 1.5, %v221
    %v223 = vmul.f32 %v218, %v222
    %vm224 = vweird.f32 %v207
    %vm225 = vweird.f32 %v218
    %vm226 = vmor %vm224, %vm225
    %v227 = vsel %vm226, %v218, %v223
    %v228 = vmul.f32 %v180, %v217
    %v229 = vmul.f32 %v194, %v217
    %v230 = vmul.f32 %v182, %v227
    %v231 = vmul.f32 %v196, %v227
    %232 = vst [vmem:[#allocation8] sm:$0xff] %v228
    %233 = vst [vmem:[#allocation8 + $0x8] sm:$0xff] %v229
    %234 = vst [vmem:[#allocation8 + $0x10] sm:$0xff] %v230
    %235 = vst [vmem:[#allocation8 + $0x18] sm:$0xff] %v231
    // Predicated region
    $region26: #{tpu_custom_call.1} parent=1 // pred_check
      _
    $region27: #{tpu_custom_call.1} parent=1 // pred_check_branch
      %237 = sbr.rel (0) target = $region29
    $region28: #{tpu_custom_call.1} parent=1 // pred_region
      %239 = vsyncadd [#allocation4], 0
      %s240 = sshll.u32 [#allocation8], 4
      %s241 = int_to_ptr.vmem [resolvable:$true] %s240
      %s242 = sshll.u32 %s3, 4
      %s243 = int_to_ptr.hbm [resolvable:$true] %s242
      %248 = dma.vmem_to_hbm [thread:$0]  %s241, 512, %s243, [#allocation4], 256, 256, 16
    $region29: #{tpu_custom_call.1} parent=1 // pred_fallthru
      _
    // Predicated region
    $region30: #{tpu_custom_call.1} parent=1 // pred_check
      _
    $region31: #{tpu_custom_call.1} parent=1 // pred_check_branch
      %250 = sbr.rel (0) target = $region33
    $region32: #{tpu_custom_call.1} parent=1 // pred_region
      %252 = dma.done [#allocation4], 512
    $region33: #{tpu_custom_call.1} parent=1 // pred_fallthru
      _
    %253 = vsyncpa [#allocation3], 1
    %254 = vsyncpa [#allocation6], 1
    %255 = vsyncpa [#allocation4], 1

</llo_original>
